<compile_context>
chip_gen: v7x
topology: tpu7x:2x2x1
jax: 0.10.0
libtpu: 0.0.40
codegen_flags: <defaults>
</compile_context>

<pallas_src>
import math

import jax
import jax.numpy as jnp
from jax.experimental import pallas as pl
from jax.experimental.pallas import tpu as pltpu

# ---------------- static config (DWNConfig defaults) ----------------
D_MODEL = 10
DIM_AMP = 4
HIDDEN = DIM_AMP * D_MODEL      # 40
SCALE = 1.0                     # config.scale default
SQRT2 = 2.0 ** 0.5


# ---------------- Cayley transform (plain-JAX param preprocessing) ----------
def cayley(W):
    cout, cin = W.shape
    if cin > cout:
        return cayley(W.T).T
    U, V = W[:cin, :], W[cin:, :]
    I = jnp.eye(cin, dtype=W.dtype)
    A = U - U.T + V.T @ V
    iIpA = jnp.linalg.inv(I + A)
    return jnp.concatenate([iIpA @ (I - A), -2.0 * V @ iIpA], axis=0)


# ---------------- deterministic parameter init (nn.Linear-style) ------------
def _init_linear(key, fout, fin_total, bias=True):
    kw, kb = jax.random.split(key)
    bound = 1.0 / math.sqrt(fin_total)
    W = jax.random.uniform(kw, (fout, fin_total), jnp.float32, -bound, bound)
    b = (jax.random.uniform(kb, (fout,), jnp.float32, -bound, bound)
         if bias else None)
    return W, b


def make_raw_params(key):
    """Raw (PyTorch-equivalent) per-layer parameters: (Bt, A, psi, bias)."""
    keys = jax.random.split(key, 4)
    fc = []
    dims = [(D_MODEL, HIDDEN), (HIDDEN, HIDDEN), (HIDDEN, HIDDEN)]
    for k, (fin, fout) in zip(keys[:3], dims):
        W, b = _init_linear(k, fout, fin + fout, bias=True)
        alpha = jnp.linalg.norm(W)              # alpha.data = weight.norm()
        psi = jnp.zeros((fout,), jnp.float32)   # psi init = zeros
        Q = cayley(alpha * W / jnp.linalg.norm(W))   # (fout, fin+fout)
        Bt = Q[:, fout:].T                      # (fin,  fout)
        A_mat = Q[:, :fout]                     # (fout, fout)
        fc.append((Bt, A_mat, psi, b))

    # SandwichLin(HIDDEN -> D_MODEL, bias=False, AB=False)
    W4, _ = _init_linear(keys[3], D_MODEL, HIDDEN + D_MODEL, bias=False)
    alpha4 = jnp.linalg.norm(W4)
    Q4 = cayley(alpha4 * W4 / jnp.linalg.norm(W4))   # (D_MODEL, HIDDEN+D_MODEL)
    lin_Bt = Q4[:, D_MODEL:].T                       # (HIDDEN, D_MODEL)
    return {"fc": fc, "lin_Bt": lin_Bt}


def derive_kernel_params(raw):
    """Fold exp(+/-psi), sqrt(2) and scale into transposed weight matrices.

    Kernel works in the (features, batch) layout:
      h  = W_scaled @ x_t + bias            (W_scaled = sqrt2*exp(-psi)[:,None]*Bt.T*scale_in)
      z  = relu(h)
      x' = A_scaled @ z                     (A_scaled = sqrt2 * A.T * exp(psi)[None,:])
    """
    mats = []
    biases = []
    # layer 1 sees FirstChannel's scale AND its own input scale -> scale**2
    in_scales = [SCALE * SCALE, SCALE, SCALE]
    for (Bt, A_mat, psi, b), s in zip(raw["fc"], in_scales):
        W_scaled = (SQRT2 * jnp.exp(-psi))[:, None] * Bt.T * s   # (fout, fin)
        A_scaled = SQRT2 * A_mat.T * jnp.exp(psi)[None, :]       # (fout, fout)
        mats += [W_scaled, A_scaled]
        biases.append(b)
    w4 = SCALE * raw["lin_Bt"].T                                 # (D_MODEL, HIDDEN)
    bias_slab = jnp.stack(biases, axis=0)[:, :, None]            # (3, HIDDEN, 1)
    return tuple(mats) + (w4, bias_slab)


# ---------------- Pallas kernel: the whole MLP hot path ----------------------
def lmlp_kernel(x_ref,
                w1_ref, a1_ref, w2_ref, a2_ref, w3_ref, a3_ref,
                w4_ref, bias_ref,
                o_ref):
    # x_ref: (D_MODEL, tb)  -- batch on the lane axis, fully lane-dense.
    x = x_ref[...]

    def sandwich_fc(x, w_ref, a_ref, layer):
        h = jnp.dot(w_ref[...], x, preferred_element_type=jnp.float32)
        h = jnp.maximum(h + bias_ref[layer], 0.0)     # bias_ref[layer]: (HIDDEN, 1)
        return jnp.dot(a_ref[...], h, preferred_element_type=jnp.float32)

    x = sandwich_fc(x, w1_ref, a1_ref, 0)
    x = sandwich_fc(x, w2_ref, a2_ref, 1)
    x = sandwich_fc(x, w3_ref, a3_ref, 2)

    # SandwichLin (bias=False, AB=False), then Identity (dropout p=0)
    o_ref[...] = jnp.dot(w4_ref[...], x, preferred_element_type=jnp.float32)


# ---------------- wrapper -----------------------------------------------------
def lmlp_forward(x, params, tb=None):
    """x: (B, d_in) with d_in >= D_MODEL.  Returns (B, D_MODEL)."""
    # FirstChannel slice + transpose to (features, batch) + batch pad: one tiny
    # fused XLA op on (B, 10) data.
    x = x[..., :D_MODEL].astype(jnp.float32)
    B = x.shape[0]
    xt = x.T                                             # (D_MODEL, B)

    if tb is None:
        b_pad = max(128, -(-B // 128) * 128)             # round up to 128 lanes
        tb = min(b_pad, 1024)                            # safe for v7x 64 MiB VMEM
    # tile must be lane-dense (multiple of 128) or cover the whole (padded) batch
    b_pad = -(-max(B, tb) // tb) * tb
    assert tb % 128 == 0 or tb == b_pad, "tb must be a multiple of 128"

    if b_pad != B:
        xt = jnp.pad(xt, ((0, 0), (0, b_pad - B)))       # zero-pad dead lanes

    def const_spec(arr):
        nd = arr.ndim
        return pl.BlockSpec(arr.shape, lambda i, _n=nd: (0,) * _n)

    in_specs = [pl.BlockSpec((D_MODEL, tb), lambda i: (0, i))]
    in_specs += [const_spec(p) for p in params]
    out_specs = pl.BlockSpec((D_MODEL, tb), lambda i: (0, i))

    out_t = pl.pallas_call(
        lmlp_kernel,
        out_shape=jax.ShapeDtypeStruct((D_MODEL, b_pad), jnp.float32),
        grid=(b_pad // tb,),
        in_specs=in_specs,
        out_specs=out_specs,
        compiler_params=pltpu.CompilerParams(
            dimension_semantics=("parallel",)),
    )(xt, *params)

    return out_t[:, :B].T                                # back to (B, D_MODEL)


# ---------------- pure-JAX reference (PyTorch-faithful, unfolded) -------------
def lmlp_reference(x, raw):
    y = SCALE * x[..., :D_MODEL]
    for (Bt, A_mat, psi, b) in raw["fc"]:
        h = (SCALE * y) @ Bt
        h = h * jnp.exp(-psi) * SQRT2 + b
        h = jnp.maximum(h, 0.0) * jnp.exp(psi)
        y = SQRT2 * (h @ A_mat)
    return SCALE * (y @ raw["lin_Bt"])


if __name__ == "__main__":
    key = jax.random.PRNGKey(0)
    k_param, k_x = jax.random.split(key)

    raw = make_raw_params(k_param)
    params = derive_kernel_params(raw)
    x = jax.random.normal(k_x, (16, D_MODEL), jnp.float32)   # (batch, d_model)

    out = lmlp_forward(x, params)
    out = jax.block_until_ready(out)

    ref = lmlp_reference(x, raw)
    assert out.shape == (16, D_MODEL)
    assert jnp.allclose(out, ref, atol=1e-4, rtol=1e-4), "mismatch vs reference"

    print("KERNEL_OK")
</pallas_src>

<mosaic_0001>
module attributes {stable_mosaic.version = 11 : i64} {
  func.func @lmlp_kernel(%arg0: i32, %arg1: memref<10x128xf32, #tpu.memory_space<vmem>>, %arg2: memref<40x10xf32, #tpu.memory_space<vmem>>, %arg3: memref<40x40xf32, #tpu.memory_space<vmem>>, %arg4: memref<40x40xf32, #tpu.memory_space<vmem>>, %arg5: memref<40x40xf32, #tpu.memory_space<vmem>>, %arg6: memref<40x40xf32, #tpu.memory_space<vmem>>, %arg7: memref<40x40xf32, #tpu.memory_space<vmem>>, %arg8: memref<10x40xf32, #tpu.memory_space<vmem>>, %arg9: memref<3x40x1xf32, #tpu.memory_space<vmem>>, %arg10: memref<10x128xf32, #tpu.memory_space<vmem>>) attributes {dimension_semantics = [#tpu.dimension_semantics<parallel>], iteration_bounds = array<i64: 1>, scalar_prefetch = 0 : i64, scratch_operands = 0 : i64, tpu.core_type = #tpu.core_type<tc>, window_params = [{transform_indices = @transform_0, window_bounds = array<i64: 10, 128>}, {pipeline_mode = #tpu.pipeline_mode<synchronous>, transform_indices = @transform_1, window_bounds = array<i64: 40, 10>}, {pipeline_mode = #tpu.pipeline_mode<synchronous>, transform_indices = @transform_2, window_bounds = array<i64: 40, 40>}, {pipeline_mode = #tpu.pipeline_mode<synchronous>, transform_indices = @transform_3, window_bounds = array<i64: 40, 40>}, {pipeline_mode = #tpu.pipeline_mode<synchronous>, transform_indices = @transform_4, window_bounds = array<i64: 40, 40>}, {pipeline_mode = #tpu.pipeline_mode<synchronous>, transform_indices = @transform_5, window_bounds = array<i64: 40, 40>}, {pipeline_mode = #tpu.pipeline_mode<synchronous>, transform_indices = @transform_6, window_bounds = array<i64: 40, 40>}, {pipeline_mode = #tpu.pipeline_mode<synchronous>, transform_indices = @transform_7, window_bounds = array<i64: 10, 40>}, {pipeline_mode = #tpu.pipeline_mode<synchronous>, transform_indices = @transform_8, window_bounds = array<i64: 3, 40, 1>}, {transform_indices = @transform_9, window_bounds = array<i64: 10, 128>}]} {
    %c0 = arith.constant 0 : index
    %c0_0 = arith.constant 0 : index
    %0 = vector.load %arg1[%c0, %c0_0] : memref<10x128xf32, #tpu.memory_space<vmem>>, vector<10x128xf32>
    %c0_1 = arith.constant 0 : index
    %c0_2 = arith.constant 0 : index
    %1 = vector.load %arg2[%c0_1, %c0_2] : memref<40x10xf32, #tpu.memory_space<vmem>>, vector<40x10xf32>
    %cst = arith.constant dense<0.000000e+00> : vector<40x128xf32>
    %2 = tpu.matmul %1, %0, %cst {dimension_numbers = #tpu.dot_dimension_numbers<[1], [0], [0], [1], [0, 0, 1, 1], [], []>} : vector<40x10xf32>, vector<10x128xf32>, vector<40x128xf32> -> vector<40x128xf32>
    %c0_3 = arith.constant 0 : index
    %c0_4 = arith.constant 0 : index
    %c0_5 = arith.constant 0 : index
    %3 = vector.load %arg9[%c0_3, %c0_4, %c0_5] : memref<3x40x1xf32, #tpu.memory_space<vmem>>, vector<1x40x1xf32>
    %4 = vector.shape_cast %3 : vector<1x40x1xf32> to vector<40x1xf32>
    %5 = vector.broadcast %4 : vector<40x1xf32> to vector<40x128xf32>
    %6 = arith.addf %2, %5 : vector<40x128xf32>
    %cst_6 = arith.constant 0.000000e+00 : f32
    %7 = vector.broadcast %cst_6 : f32 to vector<40x128xf32>
    %8 = arith.maximumf %6, %7 : vector<40x128xf32>
    %c0_7 = arith.constant 0 : index
    %c0_8 = arith.constant 0 : index
    %9 = vector.load %arg3[%c0_7, %c0_8] : memref<40x40xf32, #tpu.memory_space<vmem>>, vector<40x40xf32>
    %cst_9 = arith.constant dense<0.000000e+00> : vector<40x128xf32>
    %10 = tpu.matmul %9, %8, %cst_9 {dimension_numbers = #tpu.dot_dimension_numbers<[1], [0], [0], [1], [0, 0, 1, 1], [], []>} : vector<40x40xf32>, vector<40x128xf32>, vector<40x128xf32> -> vector<40x128xf32>
    %c0_10 = arith.constant 0 : index
    %c0_11 = arith.constant 0 : index
    %11 = vector.load %arg4[%c0_10, %c0_11] : memref<40x40xf32, #tpu.memory_space<vmem>>, vector<40x40xf32>
    %cst_12 = arith.constant dense<0.000000e+00> : vector<40x128xf32>
    %12 = tpu.matmul %11, %10, %cst_12 {dimension_numbers = #tpu.dot_dimension_numbers<[1], [0], [0], [1], [0, 0, 1, 1], [], []>} : vector<40x40xf32>, vector<40x128xf32>, vector<40x128xf32> -> vector<40x128xf32>
    %c1 = arith.constant 1 : index
    %c0_13 = arith.constant 0 : index
    %c0_14 = arith.constant 0 : index
    %13 = vector.load %arg9[%c1, %c0_13, %c0_14] : memref<3x40x1xf32, #tpu.memory_space<vmem>>, vector<1x40x1xf32>
    %14 = vector.shape_cast %13 : vector<1x40x1xf32> to vector<40x1xf32>
    %15 = vector.broadcast %14 : vector<40x1xf32> to vector<40x128xf32>
    %16 = arith.addf %12, %15 : vector<40x128xf32>
    %cst_15 = arith.constant 0.000000e+00 : f32
    %17 = vector.broadcast %cst_15 : f32 to vector<40x128xf32>
    %18 = arith.maximumf %16, %17 : vector<40x128xf32>
    %c0_16 = arith.constant 0 : index
    %c0_17 = arith.constant 0 : index
    %19 = vector.load %arg5[%c0_16, %c0_17] : memref<40x40xf32, #tpu.memory_space<vmem>>, vector<40x40xf32>
    %cst_18 = arith.constant dense<0.000000e+00> : vector<40x128xf32>
    %20 = tpu.matmul %19, %18, %cst_18 {dimension_numbers = #tpu.dot_dimension_numbers<[1], [0], [0], [1], [0, 0, 1, 1], [], []>} : vector<40x40xf32>, vector<40x128xf32>, vector<40x128xf32> -> vector<40x128xf32>
    %c0_19 = arith.constant 0 : index
    %c0_20 = arith.constant 0 : index
    %21 = vector.load %arg6[%c0_19, %c0_20] : memref<40x40xf32, #tpu.memory_space<vmem>>, vector<40x40xf32>
    %cst_21 = arith.constant dense<0.000000e+00> : vector<40x128xf32>
    %22 = tpu.matmul %21, %20, %cst_21 {dimension_numbers = #tpu.dot_dimension_numbers<[1], [0], [0], [1], [0, 0, 1, 1], [], []>} : vector<40x40xf32>, vector<40x128xf32>, vector<40x128xf32> -> vector<40x128xf32>
    %c2 = arith.constant 2 : index
    %c0_22 = arith.constant 0 : index
    %c0_23 = arith.constant 0 : index
    %23 = vector.load %arg9[%c2, %c0_22, %c0_23] : memref<3x40x1xf32, #tpu.memory_space<vmem>>, vector<1x40x1xf32>
    %24 = vector.shape_cast %23 : vector<1x40x1xf32> to vector<40x1xf32>
    %25 = vector.broadcast %24 : vector<40x1xf32> to vector<40x128xf32>
    %26 = arith.addf %22, %25 : vector<40x128xf32>
    %cst_24 = arith.constant 0.000000e+00 : f32
    %27 = vector.broadcast %cst_24 : f32 to vector<40x128xf32>
    %28 = arith.maximumf %26, %27 : vector<40x128xf32>
    %c0_25 = arith.constant 0 : index
    %c0_26 = arith.constant 0 : index
    %29 = vector.load %arg7[%c0_25, %c0_26] : memref<40x40xf32, #tpu.memory_space<vmem>>, vector<40x40xf32>
    %cst_27 = arith.constant dense<0.000000e+00> : vector<40x128xf32>
    %30 = tpu.matmul %29, %28, %cst_27 {dimension_numbers = #tpu.dot_dimension_numbers<[1], [0], [0], [1], [0, 0, 1, 1], [], []>} : vector<40x40xf32>, vector<40x128xf32>, vector<40x128xf32> -> vector<40x128xf32>
    %c0_28 = arith.constant 0 : index
    %c0_29 = arith.constant 0 : index
    %31 = vector.load %arg8[%c0_28, %c0_29] : memref<10x40xf32, #tpu.memory_space<vmem>>, vector<10x40xf32>
    %cst_30 = arith.constant dense<0.000000e+00> : vector<10x128xf32>
    %32 = tpu.matmul %31, %30, %cst_30 {dimension_numbers = #tpu.dot_dimension_numbers<[1], [0], [0], [1], [0, 0, 1, 1], [], []>} : vector<10x40xf32>, vector<40x128xf32>, vector<10x128xf32> -> vector<10x128xf32>
    %c0_31 = arith.constant 0 : index
    %c0_32 = arith.constant 0 : index
    %33 = vector.load %arg10[%c0_31, %c0_32] : memref<10x128xf32, #tpu.memory_space<vmem>>, vector<10x128xf32>
    tpu.vector_store %arg10[%c0_31, %c0_32], %32 {strides = array<i32>} : memref<10x128xf32, #tpu.memory_space<vmem>>, vector<10x128xf32>,
    return
  }
  func.func @transform_0(%arg0: i32) -> (i32, i32) {
    %c0_i32 = arith.constant 0 : i32
    %c0_i32_0 = arith.constant 0 : i32
    return %c0_i32, %arg0 : i32, i32
  }
  func.func @transform_1(%arg0: i32) -> (i32, i32) {
    %c0_i32 = arith.constant 0 : i32
    %c0_i32_0 = arith.constant 0 : i32
    %c0_i32_1 = arith.constant 0 : i32
    return %c0_i32, %c0_i32_0 : i32, i32
  }
  func.func @transform_2(%arg0: i32) -> (i32, i32) {
    %c0_i32 = arith.constant 0 : i32
    %c0_i32_0 = arith.constant 0 : i32
    %c0_i32_1 = arith.constant 0 : i32
    return %c0_i32, %c0_i32_0 : i32, i32
  }
  func.func @transform_3(%arg0: i32) -> (i32, i32) {
    %c0_i32 = arith.constant 0 : i32
    %c0_i32_0 = arith.constant 0 : i32
    %c0_i32_1 = arith.constant 0 : i32
    return %c0_i32, %c0_i32_0 : i32, i32
  }
  func.func @transform_4(%arg0: i32) -> (i32, i32) {
    %c0_i32 = arith.constant 0 : i32
    %c0_i32_0 = arith.constant 0 : i32
    %c0_i32_1 = arith.constant 0 : i32
    return %c0_i32, %c0_i32_0 : i32, i32
  }
  func.func @transform_5(%arg0: i32) -> (i32, i32) {
    %c0_i32 = arith.constant 0 : i32
    %c0_i32_0 = arith.constant 0 : i32
    %c0_i32_1 = arith.constant 0 : i32
    return %c0_i32, %c0_i32_0 : i32, i32
  }
  func.func @transform_6(%arg0: i32) -> (i32, i32) {
    %c0_i32 = arith.constant 0 : i32
    %c0_i32_0 = arith.constant 0 : i32
    %c0_i32_1 = arith.constant 0 : i32
    return %c0_i32, %c0_i32_0 : i32, i32
  }
  func.func @transform_7(%arg0: i32) -> (i32, i32) {
    %c0_i32 = arith.constant 0 : i32
    %c0_i32_0 = arith.constant 0 : i32
    %c0_i32_1 = arith.constant 0 : i32
    return %c0_i32, %c0_i32_0 : i32, i32
  }
  func.func @transform_8(%arg0: i32) -> (i32, i32, i32) {
    %c0_i32 = arith.constant 0 : i32
    %c0_i32_0 = arith.constant 0 : i32
    %c0_i32_1 = arith.constant 0 : i32
    %c0_i32_2 = arith.constant 0 : i32
    return %c0_i32, %c0_i32_0, %c0_i32_1 : i32, i32, i32
  }
  func.func @transform_9(%arg0: i32) -> (i32, i32) {
    %c0_i32 = arith.constant 0 : i32
    %c0_i32_0 = arith.constant 0 : i32
    return %c0_i32, %arg0 : i32, i32
  }
}

</mosaic_0001>

<llo_original>
// kernel: tpu_custom_call.1
$region0: #{tpu_custom_call.1}
  #allocation0 [shape = 'u32[]', space=smem, size = 0x4, offset = 0x4, fixed_abs, tag = 'smem constant byte address 0x4 - core index']
  #allocation1 [shape = 'u32[144,128]{1,0:T(1,128)}', space=vmem, size = 0x12000, scoped, tag = 'internal scratch']
  %s0 = inlined_call_operand.hbm [shape: f32[10,128], index: 0, kind: input, shape index: {}]
  %s1 = inlined_call_operand.vmem [shape: f32[40,10], index: 1, kind: input, shape index: {}]
  %s2 = inlined_call_operand.vmem [shape: f32[40,40], index: 2, kind: input, shape index: {}]
  %s3 = inlined_call_operand.vmem [shape: f32[40,40], index: 3, kind: input, shape index: {}]
  %s4 = inlined_call_operand.vmem [shape: f32[40,40], index: 4, kind: input, shape index: {}]
  %s5 = inlined_call_operand.vmem [shape: f32[40,40], index: 5, kind: input, shape index: {}]
  %s6 = inlined_call_operand.vmem [shape: f32[40,40], index: 6, kind: input, shape index: {}]
  %s7 = inlined_call_operand.hbm [shape: f32[10,40], index: 7, kind: input, shape index: {}]
  %s8 = inlined_call_operand.vmem [shape: f32[3,40,1], index: 8, kind: input, shape index: {}]
  %s9 = inlined_call_operand.hbm [shape: f32[10,128], index: 9, kind: output, shape index: {}]
  %s10 = sld [smem:[#allocation0]]
  $region54: #{tpu_custom_call.1} parent=0
    _
  %s12 = ssub.s32 1, %s10
  %s13 = scalar_select 0, %s12, %s10
  $region1: #{tpu_custom_call.1} parent=0
    #allocation2 [shape = 'u8[8192]{0}', space=vmem, size = 0x2000, scoped, tag = 'input window, operand 0, single buffered']
    #allocation3 [shape = 's32[1]{0}', space=sflag, size = 0x4, scoped, tag = 'scoped memory for tpu_custom_call.1']
    #allocation4 [shape = 's32[1]{0}', space=sflag, size = 0x4, scoped, tag = 'scoped memory for tpu_custom_call.1']
    #allocation5 [shape = 'u8[8192]{0}', space=vmem, size = 0x2000, scoped, tag = 'input window, operand 7, single buffered']
    #allocation6 [shape = 's32[1]{0}', space=sflag, size = 0x4, scoped, tag = 'scoped memory for tpu_custom_call.1']
    #allocation7 [shape = 'u8[8192]{0}', space=vmem, size = 0x2000, scoped, tag = 'output window, operand 0, single buffered']
    %14 = vsyncpa [#allocation3], 0
    %15 = vsyncpa [#allocation6], 0
    %16 = vsyncpa [#allocation4], 0
    // Predicated region
    $region2: #{tpu_custom_call.1} parent=1 // pred_check
      _
    $region3: #{tpu_custom_call.1} parent=1 // pred_check_branch
      %18 = sbr.rel (0) target = $region5
    $region4: #{tpu_custom_call.1} parent=1 // pred_region
      %s20 = ssub.s32 256, 256
      %21 = vsyncadd [#allocation3], %s20
      %s22 = sshll.u32 [#allocation2], 4
      %s23 = int_to_ptr.vmem [resolvable:$true] %s22
      %28 = dma.hbm_to_vmem [thread:$0]  %s0, 256, %s23, [#allocation3], 128, 128, 8
    $region5: #{tpu_custom_call.1} parent=1 // pred_fallthru
      _
    // Predicated region
    $region6: #{tpu_custom_call.1} parent=1 // pred_check
      _
    $region7: #{tpu_custom_call.1} parent=1 // pred_check_branch
      %30 = sbr.rel (0) target = $region9
    $region8: #{tpu_custom_call.1} parent=1 // pred_region
      _
    $region9: #{tpu_custom_call.1} parent=1 // pred_fallthru
      _
    // Predicated region
    $region10: #{tpu_custom_call.1} parent=1 // pred_check
      _
    $region11: #{tpu_custom_call.1} parent=1 // pred_check_branch
      %32 = sbr.rel (0) target = $region13
    $region12: #{tpu_custom_call.1} parent=1 // pred_region
      _
    $region13: #{tpu_custom_call.1} parent=1 // pred_fallthru
      _
    // Predicated region
    $region14: #{tpu_custom_call.1} parent=1 // pred_check
      _
    $region15: #{tpu_custom_call.1} parent=1 // pred_check_branch
      %34 = sbr.rel (0) target = $region17
    $region16: #{tpu_custom_call.1} parent=1 // pred_region
      _
    $region17: #{tpu_custom_call.1} parent=1 // pred_fallthru
      _
    // Predicated region
    $region18: #{tpu_custom_call.1} parent=1 // pred_check
      _
    $region19: #{tpu_custom_call.1} parent=1 // pred_check_branch
      %36 = sbr.rel (0) target = $region21
    $region20: #{tpu_custom_call.1} parent=1 // pred_region
      _
    $region21: #{tpu_custom_call.1} parent=1 // pred_fallthru
      _
    // Predicated region
    $region22: #{tpu_custom_call.1} parent=1 // pred_check
      _
    $region23: #{tpu_custom_call.1} parent=1 // pred_check_branch
      %38 = sbr.rel (0) target = $region25
    $region24: #{tpu_custom_call.1} parent=1 // pred_region
      _
    $region25: #{tpu_custom_call.1} parent=1 // pred_fallthru
      _
    // Predicated region
    $region26: #{tpu_custom_call.1} parent=1 // pred_check
      _
    $region27: #{tpu_custom_call.1} parent=1 // pred_check_branch
      %40 = sbr.rel (0) target = $region29
    $region28: #{tpu_custom_call.1} parent=1 // pred_region
      _
    $region29: #{tpu_custom_call.1} parent=1 // pred_fallthru
      _
    // Predicated region
    $region30: #{tpu_custom_call.1} parent=1 // pred_check
      _
    $region31: #{tpu_custom_call.1} parent=1 // pred_check_branch
      %42 = sbr.rel (0) target = $region33
    $region32: #{tpu_custom_call.1} parent=1 // pred_region
      %s44 = ssub.s32 256, 256
      %45 = vsyncadd [#allocation6], %s44
      %s46 = sshll.u32 [#allocation5], 4
      %s47 = int_to_ptr.vmem [resolvable:$true] %s46
      %52 = dma.hbm_to_vmem [thread:$0]  %s7, 256, %s47, [#allocation6], 128, 128, 8
    $region33: #{tpu_custom_call.1} parent=1 // pred_fallthru
      _
    // Predicated region
    $region34: #{tpu_custom_call.1} parent=1 // pred_check
      _
    $region35: #{tpu_custom_call.1} parent=1 // pred_check_branch
      %54 = sbr.rel (0) target = $region37
    $region36: #{tpu_custom_call.1} parent=1 // pred_region
      _
    $region37: #{tpu_custom_call.1} parent=1 // pred_fallthru
      _
    // Predicated region
    $region38: #{tpu_custom_call.1} parent=1 // pred_check
      _
    $region39: #{tpu_custom_call.1} parent=1 // pred_check_branch
      %56 = sbr.rel (0) target = $region41
    $region40: #{tpu_custom_call.1} parent=1 // pred_region
      %57 = dma.done [#allocation3], 256
    $region41: #{tpu_custom_call.1} parent=1 // pred_fallthru
      _
    // Predicated region
    $region42: #{tpu_custom_call.1} parent=1 // pred_check
      _
    $region43: #{tpu_custom_call.1} parent=1 // pred_check_branch
      %59 = sbr.rel (0) target = $region45
    $region44: #{tpu_custom_call.1} parent=1 // pred_region
      %60 = dma.done [#allocation6], 256
    $region45: #{tpu_custom_call.1} parent=1 // pred_fallthru
      _
    %v61 = vld [vmem:[#allocation2] sm:$0xff]
    %v62 = vld [vmem:[#allocation2 + $0x8] sm:$0x3]
    %v63 = vld [vmem:[%s1] sm:$0xff]
    %v64 = vld [vmem:[%s1 + $0x8] sm:$0xff]
    %v65 = vld [vmem:[%s1 + $0x10] sm:$0xff]
    %v66 = vld [vmem:[%s1 + $0x18] sm:$0xff]
    %v67 = vld [vmem:[%s1 + $0x20] sm:$0xff]
    %v68 = vld [vmem:[%s8] sm:$0xff]
    %v69 = vld [vmem:[%s8 + $0x8] sm:$0xff]
    %v70 = vld [vmem:[%s8 + $0x10] sm:$0xff]
    %v71 = vld [vmem:[%s8 + $0x18] sm:$0xff]
    %v72 = vld [vmem:[%s8 + $0x20] sm:$0xff]
    %74 = vset.pattern.permute.xlu0 0
    %75 = vperm.xlu0 %74, %v68
    %v76 = vpop.permute.xlu0 %75
    %79 = vset.pattern.permute.xlu0 0
    %80 = vperm.xlu0 %79, %v69
    %v81 = vpop.permute.xlu0 %80
    %84 = vset.pattern.permute.xlu0 0
    %85 = vperm.xlu0 %84, %v70
    %v86 = vpop.permute.xlu0 %85
    %89 = vset.pattern.permute.xlu0 0
    %90 = vperm.xlu0 %89, %v71
    %v91 = vpop.permute.xlu0 %90
    %94 = vset.pattern.permute.xlu0 0
    %95 = vperm.xlu0 %94, %v72
    %v96 = vpop.permute.xlu0 %95
    %vm98 = vcmask 80896
    %v100 = vsel %vm98, %v63, 0
    %v103 = vsel %vm98, %v64, 0
    %v106 = vsel %vm98, %v65, 0
    %v109 = vsel %vm98, %v66, 0
    %v112 = vsel %vm98, %v67, 0
    %vm114 = vcmask 1041408
    %v116 = vsel %vm114, %v62, 0
    %118 = vmatprep.subr.mxu0 0.0
    %119 = vmatpush1.msra.mxu0 %v61
    %120 = vmatprep.subr.mxu0 0.0
    %121 = vmatpush1.msra.mxu0 %v116
    %122 = vmatprep.subr.mxu0 0.0
    %123 = vmatpush1.msra.mxu0 0.0
    %124 = vmatprep.subr.mxu0 0.0
    %125 = vmatpush1.msra.mxu0 0.0
    %126 = vmatprep.subr.mxu0 0.0
    %127 = vmatpush1.msra.mxu0 0.0
    %128 = vmatprep.subr.mxu0 0.0
    %129 = vmatpush1.msra.mxu0 0.0
    %130 = vmatprep.subr.mxu0 0.0
    %131 = vmatpush1.msra.mxu0 0.0
    %132 = vmatprep.subr.mxu0 0.0
    %133 = vmatpush1.msra.mxu0 0.0
    %134 = vmatprep.subr.mxu0 0.0
    %135 = vmatpush1.msra.mxu0 0.0
    %136 = vmatprep.subr.mxu0 0.0
    %137 = vmatpush1.msra.mxu0 0.0
    %138 = vmatprep.subr.mxu0 0.0
    %139 = vmatpush1.msra.mxu0 0.0
    %140 = vmatprep.subr.mxu0 0.0
    %141 = vmatpush1.msra.mxu0 0.0
    %142 = vmatprep.subr.mxu0 0.0
    %143 = vmatpush1.msra.mxu0 0.0
    %144 = vmatprep.subr.mxu0 0.0
    %145 = vmatpush1.msra.mxu0 0.0
    %146 = vmatprep.subr.mxu0 0.0
    %147 = vmatpush1.msra.mxu0 0.0
    %148 = vmatprep.subr.mxu0 0.0
    %149 = vmatpush1.msra.mxu0 0.0
    %150 = vmatprep.subr.mxu0 0.0
    %151 = vmatpush1.msra.mxu0 0.0
    %152 = vmatprep.subr.mxu0 0.0
    %153 = vmatpush1.msra.mxu0 0.0
    %154 = vmatprep.subr.mxu0 0.0
    %155 = vmatpush1.msra.mxu0 0.0
    %156 = vmatprep.subr.mxu0 0.0
    %157 = vmatpush1.msra.mxu0 0.0
    %158 = vmatprep.subr.mxu0 0.0
    %159 = vmatpush1.msra.mxu0 0.0
    %160 = vmatprep.subr.mxu0 0.0
    %161 = vmatpush1.msra.mxu0 0.0
    %162 = vmatprep.subr.mxu0 0.0
    %163 = vmatpush1.msra.mxu0 0.0
    %164 = vmatprep.subr.mxu0 0.0
    %165 = vmatpush1.msra.mxu0 0.0
    %166 = vmatprep.subr.mxu0 0.0
    %167 = vmatpush1.msra.mxu0 0.0
    %168 = vmatprep.subr.mxu0 0.0
    %169 = vmatpush1.msra.mxu0 0.0
    %170 = vmatprep.subr.mxu0 0.0
    %171 = vmatpush1.msra.mxu0 0.0
    %172 = vmatprep.subr.mxu0 0.0
    %173 = vmatpush1.msra.mxu0 0.0
    %174 = vmatprep.subr.mxu0 0.0
    %175 = vmatpush1.msra.mxu0 0.0
    %176 = vmatprep.subr.mxu0 0.0
    %177 = vmatpush1.msra.mxu0 0.0
    %178 = vmatprep.subr.mxu0 0.0
    %179 = vmatpush1.msra.mxu0 0.0
    %180 = vmatprep.subr.mxu0 0.0
    %181 = vmatpush1.msra.mxu0 0.0
    %182 = vmatprep.mubr.f32.mxu0 0.0
    %183 = vmatmul.mubr.f32.gmra.mrb[0].mxu0 %v100
    %v184 = vpop.f32.mrb[0].mxu0
    %v185 = vadd.f32 %v76, %v184
    %v186 = vpop.f32.mrb[0].mxu0
    %187 = vmatprep.mubr.f32.mxu0 0.0
    %188 = vmatmul.mubr.f32.gmra.mrb[0].mxu0 %v103
    %v189 = vpop.f32.mrb[0].mxu0
    %v190 = vadd.f32 %v81, %v189
    %v191 = vpop.f32.mrb[0].mxu0
    %192 = vmatprep.mubr.f32.mxu0 0.0
    %193 = vmatmul.mubr.f32.gmra.mrb[0].mxu0 %v106
    %v194 = vpop.f32.mrb[0].mxu0
    %v195 = vadd.f32 %v86, %v194
    %v196 = vpop.f32.mrb[0].mxu0
    %197 = vmatprep.mubr.f32.mxu0 0.0
    %198 = vmatmul.mubr.f32.gmra.mrb[0].mxu0 %v109
    %v199 = vpop.f32.mrb[0].mxu0
    %v200 = vadd.f32 %v91, %v199
    %v201 = vpop.f32.mrb[0].mxu0
    %202 = vmatprep.mubr.f32.mxu0 0.0
    %203 = vmatmul.mubr.f32.gmra.mrb[0].mxu0 %v112
    %v204 = vpop.f32.mrb[0].mxu0
    %v205 = vadd.f32 %v96, %v204
    %v206 = vpop.f32.mrb[0].mxu0
    %207 = vdwg.mxu0
    %v208 = vmax.f32 %v185, 0.0
    %v209 = vmax.f32 %v190, 0.0
    %v210 = vmax.f32 %v195, 0.0
    %v211 = vmax.f32 %v200, 0.0
    %v212 = vmax.f32 %v205, 0.0
    %v213 = vld [vmem:[%s2] sm:$0xff]
    %v214 = vld [vmem:[%s2 + $0x8] sm:$0xff]
    %v215 = vld [vmem:[%s2 + $0x10] sm:$0xff]
    %v216 = vld [vmem:[%s2 + $0x18] sm:$0xff]
    %v217 = vld [vmem:[%s2 + $0x20] sm:$0xff]
    %vm218 = vcmask 326656
    %v220 = vsel %vm218, %v213, 0
    %v223 = vsel %vm218, %v214, 0
    %v226 = vsel %vm218, %v215, 0
    %v229 = vsel %vm218, %v216, 0
    %v232 = vsel %vm218, %v217, 0
    %234 = vmatprep.subr.mxu0 0.0
    %235 = vmatpush1.msra.mxu0 %v208
    %236 = vmatprep.subr.mxu0 0.0
    %237 = vmatpush1.msra.mxu0 %v209
    %238 = vmatprep.subr.mxu0 0.0
    %239 = vmatpush1.msra.mxu0 %v210
    %240 = vmatprep.subr.mxu0 0.0
    %241 = vmatpush1.msra.mxu0 %v211
    %242 = vmatprep.subr.mxu0 0.0
    %243 = vmatpush1.msra.mxu0 %v212
    %244 = vmatprep.subr.mxu0 0.0
    %245 = vmatpush1.msra.mxu0 0.0
    %246 = vmatprep.subr.mxu0 0.0
    %247 = vmatpush1.msra.mxu0 0.0
    %248 = vmatprep.subr.mxu0 0.0
    %249 = vmatpush1.msra.mxu0 0.0
    %250 = vmatprep.subr.mxu0 0.0
    %251 = vmatpush1.msra.mxu0 0.0
    %252 = vmatprep.subr.mxu0 0.0
    %253 = vmatpush1.msra.mxu0 0.0
    %254 = vmatprep.subr.mxu0 0.0
    %255 = vmatpush1.msra.mxu0 0.0
    %256 = vmatprep.subr.mxu0 0.0
    %257 = vmatpush1.msra.mxu0 0.0
    %258 = vmatprep.subr.mxu0 0.0
    %259 = vmatpush1.msra.mxu0 0.0
    %260 = vmatprep.subr.mxu0 0.0
    %261 = vmatpush1.msra.mxu0 0.0
    %262 = vmatprep.subr.mxu0 0.0
    %263 = vmatpush1.msra.mxu0 0.0
    %264 = vmatprep.subr.mxu0 0.0
    %265 = vmatpush1.msra.mxu0 0.0
    %266 = vmatprep.subr.mxu0 0.0
    %267 = vmatpush1.msra.mxu0 0.0
    %268 = vmatprep.subr.mxu0 0.0
    %269 = vmatpush1.msra.mxu0 0.0
    %270 = vmatprep.subr.mxu0 0.0
    %271 = vmatpush1.msra.mxu0 0.0
    %272 = vmatprep.subr.mxu0 0.0
    %273 = vmatpush1.msra.mxu0 0.0
    %274 = vmatprep.subr.mxu0 0.0
    %275 = vmatpush1.msra.mxu0 0.0
    %276 = vmatprep.subr.mxu0 0.0
    %277 = vmatpush1.msra.mxu0 0.0
    %278 = vmatprep.subr.mxu0 0.0
    %279 = vmatpush1.msra.mxu0 0.0
    %280 = vmatprep.subr.mxu0 0.0
    %281 = vmatpush1.msra.mxu0 0.0
    %282 = vmatprep.subr.mxu0 0.0
    %283 = vmatpush1.msra.mxu0 0.0
    %284 = vmatprep.subr.mxu0 0.0
    %285 = vmatpush1.msra.mxu0 0.0
    %286 = vmatprep.subr.mxu0 0.0
    %287 = vmatpush1.msra.mxu0 0.0
    %288 = vmatprep.subr.mxu0 0.0
    %289 = vmatpush1.msra.mxu0 0.0
    %290 = vmatprep.subr.mxu0 0.0
    %291 = vmatpush1.msra.mxu0 0.0
    %292 = vmatprep.subr.mxu0 0.0
    %293 = vmatpush1.msra.mxu0 0.0
    %294 = vmatprep.subr.mxu0 0.0
    %295 = vmatpush1.msra.mxu0 0.0
    %296 = vmatprep.subr.mxu0 0.0
    %297 = vmatpush1.msra.mxu0 0.0
    %298 = vmatprep.mubr.f32.mxu0 0.0
    %299 = vmatmul.mubr.f32.gmra.mrb[0].mxu0 %v220
    %v300 = vpop.f32.mrb[0].mxu0
    %v301 = vadd.f32 0.0, %v300
    %v302 = vpop.f32.mrb[0].mxu0
    %303 = vmatprep.mubr.f32.mxu0 0.0
    %304 = vmatmul.mubr.f32.gmra.mrb[0].mxu0 %v223
    %v305 = vpop.f32.mrb[0].mxu0
    %v306 = vadd.f32 0.0, %v305
    %v307 = vpop.f32.mrb[0].mxu0
    %308 = vmatprep.mubr.f32.mxu0 0.0
    %309 = vmatmul.mubr.f32.gmra.mrb[0].mxu0 %v226
    %v310 = vpop.f32.mrb[0].mxu0
    %v311 = vadd.f32 0.0, %v310
    %v312 = vpop.f32.mrb[0].mxu0
    %313 = vmatprep.mubr.f32.mxu0 0.0
    %314 = vmatmul.mubr.f32.gmra.mrb[0].mxu0 %v229
    %v315 = vpop.f32.mrb[0].mxu0
    %v316 = vadd.f32 0.0, %v315
    %v317 = vpop.f32.mrb[0].mxu0
    %318 = vmatprep.mubr.f32.mxu0 0.0
    %319 = vmatmul.mubr.f32.gmra.mrb[0].mxu0 %v232
    %v320 = vpop.f32.mrb[0].mxu0
    %v321 = vadd.f32 0.0, %v320
    %v322 = vpop.f32.mrb[0].mxu0
    %323 = vdwg.mxu0
    %v324 = vld [vmem:[%s3] sm:$0xff]
    %v325 = vld [vmem:[%s3 + $0x8] sm:$0xff]
    %v326 = vld [vmem:[%s3 + $0x10] sm:$0xff]
    %v327 = vld [vmem:[%s3 + $0x18] sm:$0xff]
    %v328 = vld [vmem:[%s3 + $0x20] sm:$0xff]
    %s329 = scalar_lea.vmem %s8, 40
    %v330 = vld [vmem:[%s329] sm:$0xff]
    %v331 = vld [vmem:[%s329 + $0x8] sm:$0xff]
    %v332 = vld [vmem:[%s329 + $0x10] sm:$0xff]
    %v333 = vld [vmem:[%s329 + $0x18] sm:$0xff]
    %v334 = vld [vmem:[%s329 + $0x20] sm:$0xff]
    %336 = vset.pattern.permute.xlu0 0
    %337 = vperm.xlu0 %336, %v330
    %v338 = vpop.permute.xlu0 %337
    %341 = vset.pattern.permute.xlu0 0
    %342 = vperm.xlu0 %341, %v331
    %v343 = vpop.permute.xlu0 %342
    %346 = vset.pattern.permute.xlu0 0
    %347 = vperm.xlu0 %346, %v332
    %v348 = vpop.permute.xlu0 %347
    %351 = vset.pattern.permute.xlu0 0
    %352 = vperm.xlu0 %351, %v333
    %v353 = vpop.permute.xlu0 %352
    %356 = vset.pattern.permute.xlu0 0
    %357 = vperm.xlu0 %356, %v334
    %v358 = vpop.permute.xlu0 %357
    %v361 = vsel %vm218, %v324, 0
    %v364 = vsel %vm218, %v325, 0
    %v367 = vsel %vm218, %v326, 0
    %v370 = vsel %vm218, %v327, 0
    %v373 = vsel %vm218, %v328, 0
    %375 = vmatprep.subr.mxu0 0.0
    %376 = vmatpush1.msra.mxu0 %v301
    %377 = vmatprep.subr.mxu0 0.0
    %378 = vmatpush1.msra.mxu0 %v306
    %379 = vmatprep.subr.mxu0 0.0
    %380 = vmatpush1.msra.mxu0 %v311
    %381 = vmatprep.subr.mxu0 0.0
    %382 = vmatpush1.msra.mxu0 %v316
    %383 = vmatprep.subr.mxu0 0.0
    %384 = vmatpush1.msra.mxu0 %v321
    %385 = vmatprep.subr.mxu0 0.0
    %386 = vmatpush1.msra.mxu0 0.0
    %387 = vmatprep.subr.mxu0 0.0
    %388 = vmatpush1.msra.mxu0 0.0
    %389 = vmatprep.subr.mxu0 0.0
    %390 = vmatpush1.msra.mxu0 0.0
    %391 = vmatprep.subr.mxu0 0.0
    %392 = vmatpush1.msra.mxu0 0.0
    %393 = vmatprep.subr.mxu0 0.0
    %394 = vmatpush1.msra.mxu0 0.0
    %395 = vmatprep.subr.mxu0 0.0
    %396 = vmatpush1.msra.mxu0 0.0
    %397 = vmatprep.subr.mxu0 0.0
    %398 = vmatpush1.msra.mxu0 0.0
    %399 = vmatprep.subr.mxu0 0.0
    %400 = vmatpush1.msra.mxu0 0.0
    %401 = vmatprep.subr.mxu0 0.0
    %402 = vmatpush1.msra.mxu0 0.0
    %403 = vmatprep.subr.mxu0 0.0
    %404 = vmatpush1.msra.mxu0 0.0
    %405 = vmatprep.subr.mxu0 0.0
    %406 = vmatpush1.msra.mxu0 0.0
    %407 = vmatprep.subr.mxu0 0.0
    %408 = vmatpush1.msra.mxu0 0.0
    %409 = vmatprep.subr.mxu0 0.0
    %410 = vmatpush1.msra.mxu0 0.0
    %411 = vmatprep.subr.mxu0 0.0
    %412 = vmatpush1.msra.mxu0 0.0
    %413 = vmatprep.subr.mxu0 0.0
    %414 = vmatpush1.msra.mxu0 0.0
    %415 = vmatprep.subr.mxu0 0.0
    %416 = vmatpush1.msra.mxu0 0.0
    %417 = vmatprep.subr.mxu0 0.0
    %418 = vmatpush1.msra.mxu0 0.0
    %419 = vmatprep.subr.mxu0 0.0
    %420 = vmatpush1.msra.mxu0 0.0
    %421 = vmatprep.subr.mxu0 0.0
    %422 = vmatpush1.msra.mxu0 0.0
    %423 = vmatprep.subr.mxu0 0.0
    %424 = vmatpush1.msra.mxu0 0.0
    %425 = vmatprep.subr.mxu0 0.0
    %426 = vmatpush1.msra.mxu0 0.0
    %427 = vmatprep.subr.mxu0 0.0
    %428 = vmatpush1.msra.mxu0 0.0
    %429 = vmatprep.subr.mxu0 0.0
    %430 = vmatpush1.msra.mxu0 0.0
    %431 = vmatprep.subr.mxu0 0.0
    %432 = vmatpush1.msra.mxu0 0.0
    %433 = vmatprep.subr.mxu0 0.0
    %434 = vmatpush1.msra.mxu0 0.0
    %435 = vmatprep.subr.mxu0 0.0
    %436 = vmatpush1.msra.mxu0 0.0
    %437 = vmatprep.subr.mxu0 0.0
    %438 = vmatpush1.msra.mxu0 0.0
    %439 = vmatprep.mubr.f32.mxu0 0.0
    %440 = vmatmul.mubr.f32.gmra.mrb[0].mxu0 %v361
    %v441 = vpop.f32.mrb[0].mxu0
    %v442 = vadd.f32 %v338, %v441
    %v443 = vpop.f32.mrb[0].mxu0
    %444 = vmatprep.mubr.f32.mxu0 0.0
    %445 = vmatmul.mubr.f32.gmra.mrb[0].mxu0 %v364
    %v446 = vpop.f32.mrb[0].mxu0
    %v447 = vadd.f32 %v343, %v446
    %v448 = vpop.f32.mrb[0].mxu0
    %449 = vmatprep.mubr.f32.mxu0 0.0
    %450 = vmatmul.mubr.f32.gmra.mrb[0].mxu0 %v367
    %v451 = vpop.f32.mrb[0].mxu0
    %v452 = vadd.f32 %v348, %v451
    %v453 = vpop.f32.mrb[0].mxu0
    %454 = vmatprep.mubr.f32.mxu0 0.0
    %455 = vmatmul.mubr.f32.gmra.mrb[0].mxu0 %v370
    %v456 = vpop.f32.mrb[0].mxu0
    %v457 = vadd.f32 %v353, %v456
    %v458 = vpop.f32.mrb[0].mxu0
    %459 = vmatprep.mubr.f32.mxu0 0.0
    %460 = vmatmul.mubr.f32.gmra.mrb[0].mxu0 %v373
    %v461 = vpop.f32.mrb[0].mxu0
    %v462 = vadd.f32 %v358, %v461
    %v463 = vpop.f32.mrb[0].mxu0
    %464 = vdwg.mxu0
    %v465 = vmax.f32 %v442, 0.0
    %v466 = vmax.f32 %v447, 0.0
    %v467 = vmax.f32 %v452, 0.0
    %v468 = vmax.f32 %v457, 0.0
    %v469 = vmax.f32 %v462, 0.0
    %v470 = vld [vmem:[%s4] sm:$0xff]
    %v471 = vld [vmem:[%s4 + $0x8] sm:$0xff]
    %v472 = vld [vmem:[%s4 + $0x10] sm:$0xff]
    %v473 = vld [vmem:[%s4 + $0x18] sm:$0xff]
    %v474 = vld [vmem:[%s4 + $0x20] sm:$0xff]
    %v476 = vsel %vm218, %v470, 0
    %v479 = vsel %vm218, %v471, 0
    %v482 = vsel %vm218, %v472, 0
    %v485 = vsel %vm218, %v473, 0
    %v488 = vsel %vm218, %v474, 0
    %490 = vmatprep.subr.mxu0 0.0
    %491 = vmatpush1.msra.mxu0 %v465
    %492 = vmatprep.subr.mxu0 0.0
    %493 = vmatpush1.msra.mxu0 %v466
    %494 = vmatprep.subr.mxu0 0.0
    %495 = vmatpush1.msra.mxu0 %v467
    %496 = vmatprep.subr.mxu0 0.0
    %497 = vmatpush1.msra.mxu0 %v468
    %498 = vmatprep.subr.mxu0 0.0
    %499 = vmatpush1.msra.mxu0 %v469
    %500 = vmatprep.subr.mxu0 0.0
    %501 = vmatpush1.msra.mxu0 0.0
    %502 = vmatprep.subr.mxu0 0.0
    %503 = vmatpush1.msra.mxu0 0.0
    %504 = vmatprep.subr.mxu0 0.0
    %505 = vmatpush1.msra.mxu0 0.0
    %506 = vmatprep.subr.mxu0 0.0
    %507 = vmatpush1.msra.mxu0 0.0
    %508 = vmatprep.subr.mxu0 0.0
    %509 = vmatpush1.msra.mxu0 0.0
    %510 = vmatprep.subr.mxu0 0.0
    %511 = vmatpush1.msra.mxu0 0.0
    %512 = vmatprep.subr.mxu0 0.0
    %513 = vmatpush1.msra.mxu0 0.0
    %514 = vmatprep.subr.mxu0 0.0
    %515 = vmatpush1.msra.mxu0 0.0
    %516 = vmatprep.subr.mxu0 0.0
    %517 = vmatpush1.msra.mxu0 0.0
    %518 = vmatprep.subr.mxu0 0.0
    %519 = vmatpush1.msra.mxu0 0.0
    %520 = vmatprep.subr.mxu0 0.0
    %521 = vmatpush1.msra.mxu0 0.0
    %522 = vmatprep.subr.mxu0 0.0
    %523 = vmatpush1.msra.mxu0 0.0
    %524 = vmatprep.subr.mxu0 0.0
    %525 = vmatpush1.msra.mxu0 0.0
    %526 = vmatprep.subr.mxu0 0.0
    %527 = vmatpush1.msra.mxu0 0.0
    %528 = vmatprep.subr.mxu0 0.0
    %529 = vmatpush1.msra.mxu0 0.0
    %530 = vmatprep.subr.mxu0 0.0
    %531 = vmatpush1.msra.mxu0 0.0
    %532 = vmatprep.subr.mxu0 0.0
    %533 = vmatpush1.msra.mxu0 0.0
    %534 = vmatprep.subr.mxu0 0.0
    %535 = vmatpush1.msra.mxu0 0.0
    %536 = vmatprep.subr.mxu0 0.0
    %537 = vmatpush1.msra.mxu0 0.0
    %538 = vmatprep.subr.mxu0 0.0
    %539 = vmatpush1.msra.mxu0 0.0
    %540 = vmatprep.subr.mxu0 0.0
    %541 = vmatpush1.msra.mxu0 0.0
    %542 = vmatprep.subr.mxu0 0.0
    %543 = vmatpush1.msra.mxu0 0.0
    %544 = vmatprep.subr.mxu0 0.0
    %545 = vmatpush1.msra.mxu0 0.0
    %546 = vmatprep.subr.mxu0 0.0
    %547 = vmatpush1.msra.mxu0 0.0
    %548 = vmatprep.subr.mxu0 0.0
    %549 = vmatpush1.msra.mxu0 0.0
    %550 = vmatprep.subr.mxu0 0.0
    %551 = vmatpush1.msra.mxu0 0.0
    %552 = vmatprep.subr.mxu0 0.0
    %553 = vmatpush1.msra.mxu0 0.0
    %554 = vmatprep.mubr.f32.mxu0 0.0
    %555 = vmatmul.mubr.f32.gmra.mrb[0].mxu0 %v476
    %v556 = vpop.f32.mrb[0].mxu0
    %v557 = vadd.f32 0.0, %v556
    %v558 = vpop.f32.mrb[0].mxu0
    %559 = vmatprep.mubr.f32.mxu0 0.0
    %560 = vmatmul.mubr.f32.gmra.mrb[0].mxu0 %v479
    %v561 = vpop.f32.mrb[0].mxu0
    %v562 = vadd.f32 0.0, %v561
    %v563 = vpop.f32.mrb[0].mxu0
    %564 = vmatprep.mubr.f32.mxu0 0.0
    %565 = vmatmul.mubr.f32.gmra.mrb[0].mxu0 %v482
    %v566 = vpop.f32.mrb[0].mxu0
    %v567 = vadd.f32 0.0, %v566
    %v568 = vpop.f32.mrb[0].mxu0
    %569 = vmatprep.mubr.f32.mxu0 0.0
    %570 = vmatmul.mubr.f32.gmra.mrb[0].mxu0 %v485
    %v571 = vpop.f32.mrb[0].mxu0
    %v572 = vadd.f32 0.0, %v571
    %v573 = vpop.f32.mrb[0].mxu0
    %574 = vmatprep.mubr.f32.mxu0 0.0
    %575 = vmatmul.mubr.f32.gmra.mrb[0].mxu0 %v488
    %v576 = vpop.f32.mrb[0].mxu0
    %v577 = vadd.f32 0.0, %v576
    %v578 = vpop.f32.mrb[0].mxu0
    %579 = vdwg.mxu0
    %v580 = vld [vmem:[%s5] sm:$0xff]
    %v581 = vld [vmem:[%s5 + $0x8] sm:$0xff]
    %v582 = vld [vmem:[%s5 + $0x10] sm:$0xff]
    %v583 = vld [vmem:[%s5 + $0x18] sm:$0xff]
    %v584 = vld [vmem:[%s5 + $0x20] sm:$0xff]
    %s585 = scalar_lea.vmem %s8, 80
    %v586 = vld [vmem:[%s585] sm:$0xff]
    %v587 = vld [vmem:[%s585 + $0x8] sm:$0xff]
    %v588 = vld [vmem:[%s585 + $0x10] sm:$0xff]
    %v589 = vld [vmem:[%s585 + $0x18] sm:$0xff]
    %v590 = vld [vmem:[%s585 + $0x20] sm:$0xff]
    %592 = vset.pattern.permute.xlu0 0
    %593 = vperm.xlu0 %592, %v586
    %v594 = vpop.permute.xlu0 %593
    %597 = vset.pattern.permute.xlu0 0
    %598 = vperm.xlu0 %597, %v587
    %v599 = vpop.permute.xlu0 %598
    %602 = vset.pattern.permute.xlu0 0
    %603 = vperm.xlu0 %602, %v588
    %v604 = vpop.permute.xlu0 %603
    %607 = vset.pattern.permute.xlu0 0
    %608 = vperm.xlu0 %607, %v589
    %v609 = vpop.permute.xlu0 %608
    %612 = vset.pattern.permute.xlu0 0
    %613 = vperm.xlu0 %612, %v590
    %v614 = vpop.permute.xlu0 %613
    %v617 = vsel %vm218, %v580, 0
    %v620 = vsel %vm218, %v581, 0
    %v623 = vsel %vm218, %v582, 0
    %v626 = vsel %vm218, %v583, 0
    %v629 = vsel %vm218, %v584, 0
    %631 = vmatprep.subr.mxu0 0.0
    %632 = vmatpush1.msra.mxu0 %v557
    %633 = vmatprep.subr.mxu0 0.0
    %634 = vmatpush1.msra.mxu0 %v562
    %635 = vmatprep.subr.mxu0 0.0
    %636 = vmatpush1.msra.mxu0 %v567
    %637 = vmatprep.subr.mxu0 0.0
    %638 = vmatpush1.msra.mxu0 %v572
    %639 = vmatprep.subr.mxu0 0.0
    %640 = vmatpush1.msra.mxu0 %v577
    %641 = vmatprep.subr.mxu0 0.0
    %642 = vmatpush1.msra.mxu0 0.0
    %643 = vmatprep.subr.mxu0 0.0
    %644 = vmatpush1.msra.mxu0 0.0
    %645 = vmatprep.subr.mxu0 0.0
    %646 = vmatpush1.msra.mxu0 0.0
    %647 = vmatprep.subr.mxu0 0.0
    %648 = vmatpush1.msra.mxu0 0.0
    %649 = vmatprep.subr.mxu0 0.0
    %650 = vmatpush1.msra.mxu0 0.0
    %651 = vmatprep.subr.mxu0 0.0
    %652 = vmatpush1.msra.mxu0 0.0
    %653 = vmatprep.subr.mxu0 0.0
    %654 = vmatpush1.msra.mxu0 0.0
    %655 = vmatprep.subr.mxu0 0.0
    %656 = vmatpush1.msra.mxu0 0.0
    %657 = vmatprep.subr.mxu0 0.0
    %658 = vmatpush1.msra.mxu0 0.0
    %659 = vmatprep.subr.mxu0 0.0
    %660 = vmatpush1.msra.mxu0 0.0
    %661 = vmatprep.subr.mxu0 0.0
    %662 = vmatpush1.msra.mxu0 0.0
    %663 = vmatprep.subr.mxu0 0.0
    %664 = vmatpush1.msra.mxu0 0.0
    %665 = vmatprep.subr.mxu0 0.0
    %666 = vmatpush1.msra.mxu0 0.0
    %667 = vmatprep.subr.mxu0 0.0
    %668 = vmatpush1.msra.mxu0 0.0
    %669 = vmatprep.subr.mxu0 0.0
    %670 = vmatpush1.msra.mxu0 0.0
    %671 = vmatprep.subr.mxu0 0.0
    %672 = vmatpush1.msra.mxu0 0.0
    %673 = vmatprep.subr.mxu0 0.0
    %674 = vmatpush1.msra.mxu0 0.0
    %675 = vmatprep.subr.mxu0 0.0
    %676 = vmatpush1.msra.mxu0 0.0
    %677 = vmatprep.subr.mxu0 0.0
    %678 = vmatpush1.msra.mxu0 0.0
    %679 = vmatprep.subr.mxu0 0.0
    %680 = vmatpush1.msra.mxu0 0.0
    %681 = vmatprep.subr.mxu0 0.0
    %682 = vmatpush1.msra.mxu0 0.0
    %683 = vmatprep.subr.mxu0 0.0
    %684 = vmatpush1.msra.mxu0 0.0
    %685 = vmatprep.subr.mxu0 0.0
    %686 = vmatpush1.msra.mxu0 0.0
    %687 = vmatprep.subr.mxu0 0.0
    %688 = vmatpush1.msra.mxu0 0.0
    %689 = vmatprep.subr.mxu0 0.0
    %690 = vmatpush1.msra.mxu0 0.0
    %691 = vmatprep.subr.mxu0 0.0
    %692 = vmatpush1.msra.mxu0 0.0
    %693 = vmatprep.subr.mxu0 0.0
    %694 = vmatpush1.msra.mxu0 0.0
    %695 = vmatprep.mubr.f32.mxu0 0.0
    %696 = vmatmul.mubr.f32.gmra.mrb[0].mxu0 %v617
    %v697 = vpop.f32.mrb[0].mxu0
    %v698 = vadd.f32 %v594, %v697
    %v699 = vpop.f32.mrb[0].mxu0
    %700 = vmatprep.mubr.f32.mxu0 0.0
    %701 = vmatmul.mubr.f32.gmra.mrb[0].mxu0 %v620
    %v702 = vpop.f32.mrb[0].mxu0
    %v703 = vadd.f32 %v599, %v702
    %v704 = vpop.f32.mrb[0].mxu0
    %705 = vmatprep.mubr.f32.mxu0 0.0
    %706 = vmatmul.mubr.f32.gmra.mrb[0].mxu0 %v623
    %v707 = vpop.f32.mrb[0].mxu0
    %v708 = vadd.f32 %v604, %v707
    %v709 = vpop.f32.mrb[0].mxu0
    %710 = vmatprep.mubr.f32.mxu0 0.0
    %711 = vmatmul.mubr.f32.gmra.mrb[0].mxu0 %v626
    %v712 = vpop.f32.mrb[0].mxu0
    %v713 = vadd.f32 %v609, %v712
    %v714 = vpop.f32.mrb[0].mxu0
    %715 = vmatprep.mubr.f32.mxu0 0.0
    %716 = vmatmul.mubr.f32.gmra.mrb[0].mxu0 %v629
    %v717 = vpop.f32.mrb[0].mxu0
    %v718 = vadd.f32 %v614, %v717
    %v719 = vpop.f32.mrb[0].mxu0
    %720 = vdwg.mxu0
    %v721 = vmax.f32 %v698, 0.0
    %v722 = vmax.f32 %v703, 0.0
    %v723 = vmax.f32 %v708, 0.0
    %v724 = vmax.f32 %v713, 0.0
    %v725 = vmax.f32 %v718, 0.0
    %v726 = vld [vmem:[%s6] sm:$0xff]
    %v727 = vld [vmem:[%s6 + $0x8] sm:$0xff]
    %v728 = vld [vmem:[%s6 + $0x10] sm:$0xff]
    %v729 = vld [vmem:[%s6 + $0x18] sm:$0xff]
    %v730 = vld [vmem:[%s6 + $0x20] sm:$0xff]
    %v732 = vsel %vm218, %v726, 0
    %v735 = vsel %vm218, %v727, 0
    %v738 = vsel %vm218, %v728, 0
    %v741 = vsel %vm218, %v729, 0
    %v744 = vsel %vm218, %v730, 0
    %746 = vmatprep.subr.mxu0 0.0
    %747 = vmatpush1.msra.mxu0 %v721
    %748 = vmatprep.subr.mxu0 0.0
    %749 = vmatpush1.msra.mxu0 %v722
    %750 = vmatprep.subr.mxu0 0.0
    %751 = vmatpush1.msra.mxu0 %v723
    %752 = vmatprep.subr.mxu0 0.0
    %753 = vmatpush1.msra.mxu0 %v724
    %754 = vmatprep.subr.mxu0 0.0
    %755 = vmatpush1.msra.mxu0 %v725
    %756 = vmatprep.subr.mxu0 0.0
    %757 = vmatpush1.msra.mxu0 0.0
    %758 = vmatprep.subr.mxu0 0.0
    %759 = vmatpush1.msra.mxu0 0.0
    %760 = vmatprep.subr.mxu0 0.0
    %761 = vmatpush1.msra.mxu0 0.0
    %762 = vmatprep.subr.mxu0 0.0
    %763 = vmatpush1.msra.mxu0 0.0
    %764 = vmatprep.subr.mxu0 0.0
    %765 = vmatpush1.msra.mxu0 0.0
    %766 = vmatprep.subr.mxu0 0.0
    %767 = vmatpush1.msra.mxu0 0.0
    %768 = vmatprep.subr.mxu0 0.0
    %769 = vmatpush1.msra.mxu0 0.0
    %770 = vmatprep.subr.mxu0 0.0
    %771 = vmatpush1.msra.mxu0 0.0
    %772 = vmatprep.subr.mxu0 0.0
    %773 = vmatpush1.msra.mxu0 0.0
    %774 = vmatprep.subr.mxu0 0.0
    %775 = vmatpush1.msra.mxu0 0.0
    %776 = vmatprep.subr.mxu0 0.0
    %777 = vmatpush1.msra.mxu0 0.0
    %778 = vmatprep.subr.mxu0 0.0
    %779 = vmatpush1.msra.mxu0 0.0
    %780 = vmatprep.subr.mxu0 0.0
    %781 = vmatpush1.msra.mxu0 0.0
    %782 = vmatprep.subr.mxu0 0.0
    %783 = vmatpush1.msra.mxu0 0.0
    %784 = vmatprep.subr.mxu0 0.0
    %785 = vmatpush1.msra.mxu0 0.0
    %786 = vmatprep.subr.mxu0 0.0
    %787 = vmatpush1.msra.mxu0 0.0
    %788 = vmatprep.subr.mxu0 0.0
    %789 = vmatpush1.msra.mxu0 0.0
    %790 = vmatprep.subr.mxu0 0.0
    %791 = vmatpush1.msra.mxu0 0.0
    %792 = vmatprep.subr.mxu0 0.0
    %793 = vmatpush1.msra.mxu0 0.0
    %794 = vmatprep.subr.mxu0 0.0
    %795 = vmatpush1.msra.mxu0 0.0
    %796 = vmatprep.subr.mxu0 0.0
    %797 = vmatpush1.msra.mxu0 0.0
    %798 = vmatprep.subr.mxu0 0.0
    %799 = vmatpush1.msra.mxu0 0.0
    %800 = vmatprep.subr.mxu0 0.0
    %801 = vmatpush1.msra.mxu0 0.0
    %802 = vmatprep.subr.mxu0 0.0
    %803 = vmatpush1.msra.mxu0 0.0
    %804 = vmatprep.subr.mxu0 0.0
    %805 = vmatpush1.msra.mxu0 0.0
    %806 = vmatprep.subr.mxu0 0.0
    %807 = vmatpush1.msra.mxu0 0.0
    %808 = vmatprep.subr.mxu0 0.0
    %809 = vmatpush1.msra.mxu0 0.0
    %810 = vmatprep.mubr.f32.mxu0 0.0
    %811 = vmatmul.mubr.f32.gmra.mrb[0].mxu0 %v732
    %v812 = vpop.f32.mrb[0].mxu0
    %v813 = vadd.f32 0.0, %v812
    %v814 = vpop.f32.mrb[0].mxu0
    %815 = vmatprep.mubr.f32.mxu0 0.0
    %816 = vmatmul.mubr.f32.gmra.mrb[0].mxu0 %v735
    %v817 = vpop.f32.mrb[0].mxu0
    %v818 = vadd.f32 0.0, %v817
    %v819 = vpop.f32.mrb[0].mxu0
    %820 = vmatprep.mubr.f32.mxu0 0.0
    %821 = vmatmul.mubr.f32.gmra.mrb[0].mxu0 %v738
    %v822 = vpop.f32.mrb[0].mxu0
    %v823 = vadd.f32 0.0, %v822
    %v824 = vpop.f32.mrb[0].mxu0
    %825 = vmatprep.mubr.f32.mxu0 0.0
    %826 = vmatmul.mubr.f32.gmra.mrb[0].mxu0 %v741
    %v827 = vpop.f32.mrb[0].mxu0
    %v828 = vadd.f32 0.0, %v827
    %v829 = vpop.f32.mrb[0].mxu0
    %830 = vmatprep.mubr.f32.mxu0 0.0
    %831 = vmatmul.mubr.f32.gmra.mrb[0].mxu0 %v744
    %v832 = vpop.f32.mrb[0].mxu0
    %v833 = vadd.f32 0.0, %v832
    %v834 = vpop.f32.mrb[0].mxu0
    %835 = vdwg.mxu0
    %v836 = vld [vmem:[#allocation5] sm:$0xff]
    %v837 = vld [vmem:[#allocation5 + $0x8] sm:$0x3]
    %v839 = vsel %vm218, %v836, 0
    %v842 = vsel %vm218, %v837, 0
    %844 = vmatprep.subr.mxu0 0.0
    %845 = vmatpush1.msra.mxu0 %v813
    %846 = vmatprep.subr.mxu0 0.0
    %847 = vmatpush1.msra.mxu0 %v818
    %848 = vmatprep.subr.mxu0 0.0
    %849 = vmatpush1.msra.mxu0 %v823
    %850 = vmatprep.subr.mxu0 0.0
    %851 = vmatpush1.msra.mxu0 %v828
    %852 = vmatprep.subr.mxu0 0.0
    %853 = vmatpush1.msra.mxu0 %v833
    %854 = vmatprep.subr.mxu0 0.0
    %855 = vmatpush1.msra.mxu0 0.0
    %856 = vmatprep.subr.mxu0 0.0
    %857 = vmatpush1.msra.mxu0 0.0
    %858 = vmatprep.subr.mxu0 0.0
    %859 = vmatpush1.msra.mxu0 0.0
    %860 = vmatprep.subr.mxu0 0.0
    %861 = vmatpush1.msra.mxu0 0.0
    %862 = vmatprep.subr.mxu0 0.0
    %863 = vmatpush1.msra.mxu0 0.0
    %864 = vmatprep.subr.mxu0 0.0
    %865 = vmatpush1.msra.mxu0 0.0
    %866 = vmatprep.subr.mxu0 0.0
    %867 = vmatpush1.msra.mxu0 0.0
    %868 = vmatprep.subr.mxu0 0.0
    %869 = vmatpush1.msra.mxu0 0.0
    %870 = vmatprep.subr.mxu0 0.0
    %871 = vmatpush1.msra.mxu0 0.0
    %872 = vmatprep.subr.mxu0 0.0
    %873 = vmatpush1.msra.mxu0 0.0
    %874 = vmatprep.subr.mxu0 0.0
    %875 = vmatpush1.msra.mxu0 0.0
    %876 = vmatprep.subr.mxu0 0.0
    %877 = vmatpush1.msra.mxu0 0.0
    %878 = vmatprep.subr.mxu0 0.0
    %879 = vmatpush1.msra.mxu0 0.0
    %880 = vmatprep.subr.mxu0 0.0
    %881 = vmatpush1.msra.mxu0 0.0
    %882 = vmatprep.subr.mxu0 0.0
    %883 = vmatpush1.msra.mxu0 0.0
    %884 = vmatprep.subr.mxu0 0.0
    %885 = vmatpush1.msra.mxu0 0.0
    %886 = vmatprep.subr.mxu0 0.0
    %887 = vmatpush1.msra.mxu0 0.0
    %888 = vmatprep.subr.mxu0 0.0
    %889 = vmatpush1.msra.mxu0 0.0
    %890 = vmatprep.subr.mxu0 0.0
    %891 = vmatpush1.msra.mxu0 0.0
    %892 = vmatprep.subr.mxu0 0.0
    %893 = vmatpush1.msra.mxu0 0.0
    %894 = vmatprep.subr.mxu0 0.0
    %895 = vmatpush1.msra.mxu0 0.0
    %896 = vmatprep.subr.mxu0 0.0
    %897 = vmatpush1.msra.mxu0 0.0
    %898 = vmatprep.subr.mxu0 0.0
    %899 = vmatpush1.msra.mxu0 0.0
    %900 = vmatprep.subr.mxu0 0.0
    %901 = vmatpush1.msra.mxu0 0.0
    %902 = vmatprep.subr.mxu0 0.0
    %903 = vmatpush1.msra.mxu0 0.0
    %904 = vmatprep.subr.mxu0 0.0
    %905 = vmatpush1.msra.mxu0 0.0
    %906 = vmatprep.subr.mxu0 0.0
    %907 = vmatpush1.msra.mxu0 0.0
    %908 = vmatprep.mubr.f32.mxu0 0.0
    %909 = vmatmul.mubr.f32.gmra.mrb[0].mxu0 %v839
    %v910 = vpop.f32.mrb[0].mxu0
    %v911 = vadd.f32 0.0, %v910
    %v912 = vpop.f32.mrb[0].mxu0
    %913 = vmatprep.mubr.f32.mxu0 0.0
    %914 = vmatmul.mubr.f32.gmra.mrb[0].mxu0 %v842
    %v915 = vpop.f32.mrb[0].mxu0
    %v916 = vadd.f32 0.0, %v915
    %v917 = vpop.f32.mrb[0].mxu0
    %918 = vdwg.mxu0
    %919 = vst [vmem:[#allocation7] sm:$0xff] %v911
    %920 = vst [vmem:[#allocation7 + $0x8] sm:$0x3] %v916
    // Predicated region
    $region46: #{tpu_custom_call.1} parent=1 // pred_check
      _
    $region47: #{tpu_custom_call.1} parent=1 // pred_check_branch
      %922 = sbr.rel (0) target = $region49
    $region48: #{tpu_custom_call.1} parent=1 // pred_region
      %s924 = ssub.s32 256, 256
      %925 = vsyncadd [#allocation4], %s924
      %s926 = sshll.u32 [#allocation7], 4
      %s927 = int_to_ptr.vmem [resolvable:$true] %s926
      %932 = dma.vmem_to_hbm [thread:$0]  %s927, 256, %s9, [#allocation4], 128, 128, 8
    $region49: #{tpu_custom_call.1} parent=1 // pred_fallthru
      _
    // Predicated region
    $region50: #{tpu_custom_call.1} parent=1 // pred_check
      _
    $region51: #{tpu_custom_call.1} parent=1 // pred_check_branch
      %934 = sbr.rel (0) target = $region53
    $region52: #{tpu_custom_call.1} parent=1 // pred_region
      %935 = dma.done [#allocation4], 256
    $region53: #{tpu_custom_call.1} parent=1 // pred_fallthru
      _
    %936 = vsyncpa [#allocation3], 1
    %937 = vsyncpa [#allocation6], 1
    %938 = vsyncpa [#allocation4], 1

</llo_original>
